<compile_context>
chip_gen: v7x
topology: tpu7x:2x2x1
jax: 0.10.0
libtpu: 0.0.40
codegen_flags: <defaults>
</compile_context>

<pallas_src>
import functools
import math

import jax
import jax.numpy as jnp
from jax.experimental import pallas as pl
from jax.experimental.pallas import tpu as pltpu

_LANE = 128


def _decoder_lstm_kernel(emb_ref, *refs, n_layers):
    """Single decode step: L-layer LSTM cell (seq_len = 1), lane-aligned H.

    emb_ref   : (B, E)        f32, VMEM   gathered token embeddings (layer-0 x)
    refs      : per layer l -> w_ih_l (in_dim, 4*Hp) bf16,
                               w_hh_l (Hp,     4*Hp) bf16,
                               b_l    (1,      4*Hp) f32
                then h0 (L, B, Hp) f32, c0 (L, B, Hp) f32,
                then outputs h_out (L, B, Hp) f32, c_out (L, B, Hp) f32.
    """
    layer_refs = refs[:3 * n_layers]
    h0_ref, c0_ref, h_out_ref, c_out_ref = refs[3 * n_layers:]
    Hp = h0_ref.shape[-1]

    # TODO(synk): dropout is a no-op (eval mode); training-mode dropout would
    # need pltpu.prng_seed / pltpu.prng_random_bits.
    x = emb_ref[...]                                       # (B, E) f32

    for l in range(n_layers):
        w_ih = layer_refs[3 * l][...]                      # (in_dim, 4Hp) bf16
        w_hh = layer_refs[3 * l + 1][...]                  # (Hp,     4Hp) bf16
        b = layer_refs[3 * l + 2][...]                     # (1,      4Hp) f32
        h_prev = h0_ref[l]                                 # (B, Hp) f32
        c_prev = c0_ref[l]                                 # (B, Hp) f32

        # Two MXU dots (no pad/concat of the activations); f32 accumulation.
        # TODO(synk): keep the W_hh contraction in f32 if tighter long-horizon
        # parity with the PyTorch f32 LSTM recurrence is required.
        gates = (
            jnp.dot(x.astype(jnp.bfloat16), w_ih,
                    preferred_element_type=jnp.float32)
            + jnp.dot(h_prev.astype(jnp.bfloat16), w_hh,
                      preferred_element_type=jnp.float32)
            + b)                                           # (B, 4Hp) f32

        # PyTorch gate order (i, f, g, o); each slice is a whole-vreg lane block.
        i_g = jax.nn.sigmoid(gates[:, 0 * Hp:1 * Hp])
        f_g = jax.nn.sigmoid(gates[:, 1 * Hp:2 * Hp])
        g_g = jnp.tanh(gates[:, 2 * Hp:3 * Hp])
        o_g = jax.nn.sigmoid(gates[:, 3 * Hp:4 * Hp])

        c_t = f_g * c_prev + i_g * g_g
        h_t = o_g * jnp.tanh(c_t)

        h_out_ref[l] = h_t                                 # lane-dense store
        c_out_ref[l] = c_t
        x = h_t            # inter-layer dropout disabled in eval mode -> exact


@functools.partial(jax.jit, static_argnames=("n_layers", "hidden_dim", "h_pad"))
def _decoder_step(input_ids, vocab, h0, c0, *flat_weights,
                  n_layers, hidden_dim, h_pad):
    """input_ids (B,1) int32 -> (emb (B,E), h_t (L,B,H), c_t (L,B,H))."""
    L, H, Hp = n_layers, hidden_dim, h_pad
    B = input_ids.shape[0]
    V, E = vocab.shape

    # ---- Embedding gather OUTSIDE the kernel: only B rows reach VMEM --------
    ids = jnp.clip(input_ids[:, 0].astype(jnp.int32), 0, V - 1)
    emb = jnp.take(vocab, ids, axis=0)                     # (B, E) f32

    # ---- Lane-pad the recurrent state (zeros stay zero through the cell) ----
    h0p = jnp.pad(h0, ((0, 0), (0, 0), (0, Hp - H)))
    c0p = jnp.pad(c0, ((0, 0), (0, 0), (0, Hp - H)))

    # ---- Cost estimate + explicit VMEM budget from static shapes ------------
    in_dims = [E] + [Hp] * (L - 1)
    flops = sum(2 * B * (d + Hp) * (4 * Hp) for d in in_dims)
    transcendentals = 5 * B * Hp * L                        # 3 sigmoid + 2 tanh
    io_bytes = (B * E * 4
                + sum(w.size * w.dtype.itemsize for w in flat_weights)
                + 4 * (L * B * Hp * 4))                     # h0,c0 in + h,c out
    vmem_limit = int(min(100 * 2**20, max(16 * 2**20, 2 * io_bytes + 4 * 2**20)))

    n_in = 1 + len(flat_weights) + 2
    vmem_spec = pl.BlockSpec(memory_space=pltpu.MemorySpace.VMEM)

    # TODO(synk): on v7x (2 TensorCores) add a batch grid axis with
    # dimension_semantics=("parallel",) when B is large enough (>=16).
    h_out_p, c_out_p = pl.pallas_call(
        functools.partial(_decoder_lstm_kernel, n_layers=L),
        out_shape=(jax.ShapeDtypeStruct((L, B, Hp), jnp.float32),
                   jax.ShapeDtypeStruct((L, B, Hp), jnp.float32)),
        in_specs=[vmem_spec] * n_in,
        out_specs=(vmem_spec, vmem_spec),
        input_output_aliases={n_in - 2: 0, n_in - 1: 1},    # h0->h_t, c0->c_t
        compiler_params=pltpu.CompilerParams(vmem_limit_bytes=vmem_limit),
        cost_estimate=pl.CostEstimate(flops=flops,
                                      transcendentals=transcendentals,
                                      bytes_accessed=io_bytes),
    )(emb, *flat_weights, h0p, c0p)

    return emb, h_out_p[..., :H], c_out_p[..., :H]


def init_decoder_params(key, vocab_size, embed_dim, hidden_dim, n_layers):
    """Deterministic parameter init mirroring torch.nn.Embedding + torch.nn.LSTM."""
    keys = jax.random.split(key, 1 + 4 * n_layers)
    pretrain_vectors = jax.random.normal(keys[0], (vocab_size, embed_dim),
                                         dtype=jnp.float32)
    k = 1.0 / math.sqrt(hidden_dim)
    layers = []
    for l in range(n_layers):
        in_dim = embed_dim if l == 0 else hidden_dim
        kw = keys[1 + 4 * l: 1 + 4 * (l + 1)]
        w_ih = jax.random.uniform(kw[0], (4 * hidden_dim, in_dim),
                                  minval=-k, maxval=k, dtype=jnp.float32)
        w_hh = jax.random.uniform(kw[1], (4 * hidden_dim, hidden_dim),
                                  minval=-k, maxval=k, dtype=jnp.float32)
        b_ih = jax.random.uniform(kw[2], (4 * hidden_dim,),
                                  minval=-k, maxval=k, dtype=jnp.float32)
        b_hh = jax.random.uniform(kw[3], (4 * hidden_dim,),
                                  minval=-k, maxval=k, dtype=jnp.float32)
        layers.append((w_ih, w_hh, b_ih, b_hh))
    return pretrain_vectors, layers


def pack_lstm_weights(layers, embed_dim, hidden_dim, lane=_LANE):
    """Per-layer (W_ih^T, W_hh^T, b_ih+b_hh) with each gate block padded H->Hp.

    Hp = next multiple of 128, so gate slices and h/c stores are lane-aligned.
    Weights are bf16 (MXU operands); fused biases stay f32.
    Returns (flat_weights_tuple, Hp).
    """
    H = hidden_dim
    Hp = ((H + lane - 1) // lane) * lane

    def pad_gate_cols(w_t):
        # w_t: (rows, 4H) with gate order [i|f|g|o]; pad each gate block to Hp.
        rows = w_t.shape[0]
        w4 = w_t.reshape(rows, 4, H)
        w4 = jnp.pad(w4, ((0, 0), (0, 0), (0, Hp - H)))
        return w4.reshape(rows, 4 * Hp)

    flat = []
    for l, (w_ih, w_hh, b_ih, b_hh) in enumerate(layers):
        w_ih_t = pad_gate_cols(w_ih.T)                        # (in_dim, 4Hp)
        if l > 0 and w_ih_t.shape[0] < Hp:
            # Layers >= 1 consume the Hp-padded hidden state as input.
            w_ih_t = jnp.pad(w_ih_t, ((0, Hp - w_ih_t.shape[0]), (0, 0)))
        w_hh_t = pad_gate_cols(w_hh.T)                        # (H, 4Hp)
        w_hh_t = jnp.pad(w_hh_t, ((0, Hp - H), (0, 0)))       # rows -> Hp
        b = pad_gate_cols((b_ih + b_hh)[None, :])             # (1, 4Hp) f32
        flat += [w_ih_t.astype(jnp.bfloat16),
                 w_hh_t.astype(jnp.bfloat16),
                 b]
    return tuple(flat), Hp


def decoder_forward(input_ids, vocab_embedding, packed, hidden_dim, n_layers,
                    input_hidden_state=None, input_cell_state=None):
    """input_ids: (B, 1) int32; returns (emb[:, 0, :], h_t, c_t)."""
    flat_weights, h_pad = packed
    B = input_ids.shape[0]
    if input_hidden_state is None:
        input_hidden_state = jnp.zeros((n_layers, B, hidden_dim), jnp.float32)
    if input_cell_state is None:
        input_cell_state = jnp.zeros((n_layers, B, hidden_dim), jnp.float32)
    return _decoder_step(input_ids.astype(jnp.int32), vocab_embedding,
                         input_hidden_state, input_cell_state, *flat_weights,
                         n_layers=n_layers, hidden_dim=hidden_dim, h_pad=h_pad)


def _reference_forward(input_ids, vocab_embedding, layers, hidden_dim, n_layers,
                       h0, c0):
    """Pure-jnp f32 reference matching torch.nn.LSTM (single step, eval mode)."""
    emb = jnp.take(vocab_embedding, input_ids[:, 0], axis=0)
    x = emb
    h_list, c_list = [], []
    for l, (w_ih, w_hh, b_ih, b_hh) in enumerate(layers):
        gates = x @ w_ih.T + h0[l] @ w_hh.T + b_ih + b_hh
        i_g, f_g, g_g, o_g = jnp.split(gates, 4, axis=-1)
        i_g = jax.nn.sigmoid(i_g)
        f_g = jax.nn.sigmoid(f_g)
        g_g = jnp.tanh(g_g)
        o_g = jax.nn.sigmoid(o_g)
        c_t = f_g * c0[l] + i_g * g_g
        h_t = o_g * jnp.tanh(c_t)
        h_list.append(h_t)
        c_list.append(c_t)
        x = h_t
    return emb, jnp.stack(h_list), jnp.stack(c_list)


if __name__ == "__main__":
    VOCAB, EMBED_DIM, HIDDEN_DIM, N_LAYERS, BATCH = 50, 32, 32, 2, 2

    key = jax.random.PRNGKey(0)
    k_param, k_ids, k_h, k_c = jax.random.split(key, 4)

    vocab_embedding, layers = init_decoder_params(
        k_param, VOCAB, EMBED_DIM, HIDDEN_DIM, N_LAYERS)
    packed = pack_lstm_weights(layers, EMBED_DIM, HIDDEN_DIM)

    input_ids = jax.random.randint(k_ids, (BATCH, 1), 0, VOCAB, dtype=jnp.int32)
    h0 = jax.random.normal(k_h, (N_LAYERS, BATCH, HIDDEN_DIM), jnp.float32)
    c0 = jax.random.normal(k_c, (N_LAYERS, BATCH, HIDDEN_DIM), jnp.float32)

    # Pallas kernel forward (with provided states).
    emb_out, h_t, c_t = decoder_forward(
        input_ids, vocab_embedding, packed, HIDDEN_DIM, N_LAYERS, h0, c0)
    jax.block_until_ready((emb_out, h_t, c_t))

    # Also exercise the "no initial state" branch (zeros).
    emb_out0, h_t0, c_t0 = decoder_forward(
        input_ids, vocab_embedding, packed, HIDDEN_DIM, N_LAYERS)
    jax.block_until_ready((emb_out0, h_t0, c_t0))

    # Correctness vs. a pure-jnp f32 reference of the PyTorch math.
    # The embedding gather is exact (f32 jnp.take); h/c use bf16 MXU operands
    # with f32 accumulation, so a bf16-appropriate tolerance is used there.
    ref_emb, ref_h, ref_c = _reference_forward(
        input_ids, vocab_embedding, layers, HIDDEN_DIM, N_LAYERS, h0, c0)
    assert jnp.allclose(emb_out, ref_emb, atol=1e-6, rtol=1e-6)
    assert jnp.allclose(h_t, ref_h, atol=1e-1, rtol=5e-2)
    assert jnp.allclose(c_t, ref_c, atol=1e-1, rtol=5e-2)

    z = jnp.zeros((N_LAYERS, BATCH, HIDDEN_DIM), jnp.float32)
    ref_emb0, ref_h0, ref_c0 = _reference_forward(
        input_ids, vocab_embedding, layers, HIDDEN_DIM, N_LAYERS, z, z)
    assert jnp.allclose(emb_out0, ref_emb0, atol=1e-6, rtol=1e-6)
    assert jnp.allclose(h_t0, ref_h0, atol=1e-1, rtol=5e-2)
    assert jnp.allclose(c_t0, ref_c0, atol=1e-1, rtol=5e-2)

    print("KERNEL_OK")
</pallas_src>

<mosaic_0001>
module attributes {stable_mosaic.version = 11 : i64} {
  func.func @_decoder_lstm_kernel(%arg0: memref<2x32xf32, #tpu.memory_space<vmem>>, %arg1: memref<32x512xbf16, #tpu.memory_space<vmem>>, %arg2: memref<128x512xbf16, #tpu.memory_space<vmem>>, %arg3: memref<1x512xf32, #tpu.memory_space<vmem>>, %arg4: memref<128x512xbf16, #tpu.memory_space<vmem>>, %arg5: memref<128x512xbf16, #tpu.memory_space<vmem>>, %arg6: memref<1x512xf32, #tpu.memory_space<vmem>>, %arg7: memref<2x2x128xf32, #tpu.memory_space<vmem>>, %arg8: memref<2x2x128xf32, #tpu.memory_space<vmem>>, %arg9: memref<2x2x128xf32, #tpu.memory_space<vmem>>, %arg10: memref<2x2x128xf32, #tpu.memory_space<vmem>>) attributes {dimension_semantics = [], scalar_prefetch = 0 : i64, scratch_operands = 0 : i64, tpu.core_type = #tpu.core_type<tc>} {
    %c0 = arith.constant 0 : index
    %c0_0 = arith.constant 0 : index
    %0 = vector.load %arg0[%c0, %c0_0] : memref<2x32xf32, #tpu.memory_space<vmem>>, vector<2x32xf32>
    %c0_1 = arith.constant 0 : index
    %c0_2 = arith.constant 0 : index
    %1 = vector.load %arg1[%c0_1, %c0_2] : memref<32x512xbf16, #tpu.memory_space<vmem>>, vector<32x512xbf16>
    %c0_3 = arith.constant 0 : index
    %c0_4 = arith.constant 0 : index
    %2 = vector.load %arg2[%c0_3, %c0_4] : memref<128x512xbf16, #tpu.memory_space<vmem>>, vector<128x512xbf16>
    %c0_5 = arith.constant 0 : index
    %c0_6 = arith.constant 0 : index
    %3 = vector.load %arg3[%c0_5, %c0_6] : memref<1x512xf32, #tpu.memory_space<vmem>>, vector<1x512xf32>
    %c0_7 = arith.constant 0 : index
    %c0_8 = arith.constant 0 : index
    %c0_9 = arith.constant 0 : index
    %4 = vector.load %arg7[%c0_7, %c0_8, %c0_9] : memref<2x2x128xf32, #tpu.memory_space<vmem>>, vector<1x2x128xf32>
    %5 = vector.shape_cast %4 : vector<1x2x128xf32> to vector<2x128xf32>
    %c0_10 = arith.constant 0 : index
    %c0_11 = arith.constant 0 : index
    %c0_12 = arith.constant 0 : index
    %6 = vector.load %arg8[%c0_10, %c0_11, %c0_12] : memref<2x2x128xf32, #tpu.memory_space<vmem>>, vector<1x2x128xf32>
    %7 = vector.shape_cast %6 : vector<1x2x128xf32> to vector<2x128xf32>
    %8 = arith.truncf %0 : vector<2x32xf32> to vector<2x32xbf16>
    %cst = arith.constant dense<0.000000e+00> : vector<2x512xf32>
    %9 = tpu.matmul %8, %1, %cst {dimension_numbers = #tpu.dot_dimension_numbers<[1], [0], [0], [1], [0, 0, 1, 1], [], []>} : vector<2x32xbf16>, vector<32x512xbf16>, vector<2x512xf32> -> vector<2x512xf32>
    %10 = arith.truncf %5 : vector<2x128xf32> to vector<2x128xbf16>
    %cst_13 = arith.constant dense<0.000000e+00> : vector<2x512xf32>
    %11 = tpu.matmul %10, %2, %cst_13 {dimension_numbers = #tpu.dot_dimension_numbers<[1], [0], [0], [1], [0, 0, 1, 1], [], []>} : vector<2x128xbf16>, vector<128x512xbf16>, vector<2x512xf32> -> vector<2x512xf32>
    %12 = arith.addf %9, %11 : vector<2x512xf32>
    %13 = vector.broadcast %3 : vector<1x512xf32> to vector<2x512xf32>
    %14 = arith.addf %12, %13 : vector<2x512xf32>
    %15 = vector.extract_strided_slice %14 {offsets = [0, 0], sizes = [2, 128], strides = [1, 1]} : vector<2x512xf32> to vector<2x128xf32>
    %16 = arith.negf %15 : vector<2x128xf32>
    %17 = math.exp %16 : vector<2x128xf32>
    %cst_14 = arith.constant 1.000000e+00 : f32
    %18 = vector.broadcast %cst_14 : f32 to vector<2x128xf32>
    %19 = arith.addf %18, %17 : vector<2x128xf32>
    %20 = arith.divf %18, %19 : vector<2x128xf32>
    %21 = vector.extract_strided_slice %14 {offsets = [0, 128], sizes = [2, 128], strides = [1, 1]} : vector<2x512xf32> to vector<2x128xf32>
    %22 = arith.negf %21 : vector<2x128xf32>
    %23 = math.exp %22 : vector<2x128xf32>
    %cst_15 = arith.constant 1.000000e+00 : f32
    %24 = vector.broadcast %cst_15 : f32 to vector<2x128xf32>
    %25 = arith.addf %24, %23 : vector<2x128xf32>
    %26 = arith.divf %24, %25 : vector<2x128xf32>
    %27 = vector.extract_strided_slice %14 {offsets = [0, 256], sizes = [2, 128], strides = [1, 1]} : vector<2x512xf32> to vector<2x128xf32>
    %28 = math.tanh %27 : vector<2x128xf32>
    %29 = vector.extract_strided_slice %14 {offsets = [0, 384], sizes = [2, 128], strides = [1, 1]} : vector<2x512xf32> to vector<2x128xf32>
    %30 = arith.negf %29 : vector<2x128xf32>
    %31 = math.exp %30 : vector<2x128xf32>
    %cst_16 = arith.constant 1.000000e+00 : f32
    %32 = vector.broadcast %cst_16 : f32 to vector<2x128xf32>
    %33 = arith.addf %32, %31 : vector<2x128xf32>
    %34 = arith.divf %32, %33 : vector<2x128xf32>
    %35 = arith.mulf %26, %7 : vector<2x128xf32>
    %36 = arith.mulf %20, %28 : vector<2x128xf32>
    %37 = arith.addf %35, %36 : vector<2x128xf32>
    %38 = math.tanh %37 : vector<2x128xf32>
    %39 = arith.mulf %34, %38 : vector<2x128xf32>
    %c0_17 = arith.constant 0 : index
    %c0_18 = arith.constant 0 : index
    %c0_19 = arith.constant 0 : index
    %40 = vector.load %arg9[%c0_17, %c0_18, %c0_19] : memref<2x2x128xf32, #tpu.memory_space<vmem>>, vector<1x2x128xf32>
    %41 = vector.shape_cast %40 : vector<1x2x128xf32> to vector<2x128xf32>
    %42 = vector.shape_cast %39 : vector<2x128xf32> to vector<1x2x128xf32>
    tpu.vector_store %arg9[%c0_17, %c0_18, %c0_19], %42 {strides = array<i32>} : memref<2x2x128xf32, #tpu.memory_space<vmem>>, vector<1x2x128xf32>,
    %c0_20 = arith.constant 0 : index
    %c0_21 = arith.constant 0 : index
    %c0_22 = arith.constant 0 : index
    %43 = vector.load %arg10[%c0_20, %c0_21, %c0_22] : memref<2x2x128xf32, #tpu.memory_space<vmem>>, vector<1x2x128xf32>
    %44 = vector.shape_cast %43 : vector<1x2x128xf32> to vector<2x128xf32>
    %45 = vector.shape_cast %37 : vector<2x128xf32> to vector<1x2x128xf32>
    tpu.vector_store %arg10[%c0_20, %c0_21, %c0_22], %45 {strides = array<i32>} : memref<2x2x128xf32, #tpu.memory_space<vmem>>, vector<1x2x128xf32>,
    %c0_23 = arith.constant 0 : index
    %c0_24 = arith.constant 0 : index
    %46 = vector.load %arg4[%c0_23, %c0_24] : memref<128x512xbf16, #tpu.memory_space<vmem>>, vector<128x512xbf16>
    %c0_25 = arith.constant 0 : index
    %c0_26 = arith.constant 0 : index
    %47 = vector.load %arg5[%c0_25, %c0_26] : memref<128x512xbf16, #tpu.memory_space<vmem>>, vector<128x512xbf16>
    %c0_27 = arith.constant 0 : index
    %c0_28 = arith.constant 0 : index
    %48 = vector.load %arg6[%c0_27, %c0_28] : memref<1x512xf32, #tpu.memory_space<vmem>>, vector<1x512xf32>
    %c1 = arith.constant 1 : index
    %c0_29 = arith.constant 0 : index
    %c0_30 = arith.constant 0 : index
    %49 = vector.load %arg7[%c1, %c0_29, %c0_30] : memref<2x2x128xf32, #tpu.memory_space<vmem>>, vector<1x2x128xf32>
    %50 = vector.shape_cast %49 : vector<1x2x128xf32> to vector<2x128xf32>
    %c1_31 = arith.constant 1 : index
    %c0_32 = arith.constant 0 : index
    %c0_33 = arith.constant 0 : index
    %51 = vector.load %arg8[%c1_31, %c0_32, %c0_33] : memref<2x2x128xf32, #tpu.memory_space<vmem>>, vector<1x2x128xf32>
    %52 = vector.shape_cast %51 : vector<1x2x128xf32> to vector<2x128xf32>
    %53 = arith.truncf %39 : vector<2x128xf32> to vector<2x128xbf16>
    %cst_34 = arith.constant dense<0.000000e+00> : vector<2x512xf32>
    %54 = tpu.matmul %53, %46, %cst_34 {dimension_numbers = #tpu.dot_dimension_numbers<[1], [0], [0], [1], [0, 0, 1, 1], [], []>} : vector<2x128xbf16>, vector<128x512xbf16>, vector<2x512xf32> -> vector<2x512xf32>
    %55 = arith.truncf %50 : vector<2x128xf32> to vector<2x128xbf16>
    %cst_35 = arith.constant dense<0.000000e+00> : vector<2x512xf32>
    %56 = tpu.matmul %55, %47, %cst_35 {dimension_numbers = #tpu.dot_dimension_numbers<[1], [0], [0], [1], [0, 0, 1, 1], [], []>} : vector<2x128xbf16>, vector<128x512xbf16>, vector<2x512xf32> -> vector<2x512xf32>
    %57 = arith.addf %54, %56 : vector<2x512xf32>
    %58 = vector.broadcast %48 : vector<1x512xf32> to vector<2x512xf32>
    %59 = arith.addf %57, %58 : vector<2x512xf32>
    %60 = vector.extract_strided_slice %59 {offsets = [0, 0], sizes = [2, 128], strides = [1, 1]} : vector<2x512xf32> to vector<2x128xf32>
    %61 = arith.negf %60 : vector<2x128xf32>
    %62 = math.exp %61 : vector<2x128xf32>
    %cst_36 = arith.constant 1.000000e+00 : f32
    %63 = vector.broadcast %cst_36 : f32 to vector<2x128xf32>
    %64 = arith.addf %63, %62 : vector<2x128xf32>
    %65 = arith.divf %63, %64 : vector<2x128xf32>
    %66 = vector.extract_strided_slice %59 {offsets = [0, 128], sizes = [2, 128], strides = [1, 1]} : vector<2x512xf32> to vector<2x128xf32>
    %67 = arith.negf %66 : vector<2x128xf32>
    %68 = math.exp %67 : vector<2x128xf32>
    %cst_37 = arith.constant 1.000000e+00 : f32
    %69 = vector.broadcast %cst_37 : f32 to vector<2x128xf32>
    %70 = arith.addf %69, %68 : vector<2x128xf32>
    %71 = arith.divf %69, %70 : vector<2x128xf32>
    %72 = vector.extract_strided_slice %59 {offsets = [0, 256], sizes = [2, 128], strides = [1, 1]} : vector<2x512xf32> to vector<2x128xf32>
    %73 = math.tanh %72 : vector<2x128xf32>
    %74 = vector.extract_strided_slice %59 {offsets = [0, 384], sizes = [2, 128], strides = [1, 1]} : vector<2x512xf32> to vector<2x128xf32>
    %75 = arith.negf %74 : vector<2x128xf32>
    %76 = math.exp %75 : vector<2x128xf32>
    %cst_38 = arith.constant 1.000000e+00 : f32
    %77 = vector.broadcast %cst_38 : f32 to vector<2x128xf32>
    %78 = arith.addf %77, %76 : vector<2x128xf32>
    %79 = arith.divf %77, %78 : vector<2x128xf32>
    %80 = arith.mulf %71, %52 : vector<2x128xf32>
    %81 = arith.mulf %65, %73 : vector<2x128xf32>
    %82 = arith.addf %80, %81 : vector<2x128xf32>
    %83 = math.tanh %82 : vector<2x128xf32>
    %84 = arith.mulf %79, %83 : vector<2x128xf32>
    %c1_39 = arith.constant 1 : index
    %c0_40 = arith.constant 0 : index
    %c0_41 = arith.constant 0 : index
    %85 = vector.load %arg9[%c1_39, %c0_40, %c0_41] : memref<2x2x128xf32, #tpu.memory_space<vmem>>, vector<1x2x128xf32>
    %86 = vector.shape_cast %85 : vector<1x2x128xf32> to vector<2x128xf32>
    %87 = vector.shape_cast %84 : vector<2x128xf32> to vector<1x2x128xf32>
    tpu.vector_store %arg9[%c1_39, %c0_40, %c0_41], %87 {strides = array<i32>} : memref<2x2x128xf32, #tpu.memory_space<vmem>>, vector<1x2x128xf32>,
    %c1_42 = arith.constant 1 : index
    %c0_43 = arith.constant 0 : index
    %c0_44 = arith.constant 0 : index
    %88 = vector.load %arg10[%c1_42, %c0_43, %c0_44] : memref<2x2x128xf32, #tpu.memory_space<vmem>>, vector<1x2x128xf32>
    %89 = vector.shape_cast %88 : vector<1x2x128xf32> to vector<2x128xf32>
    %90 = vector.shape_cast %82 : vector<2x128xf32> to vector<1x2x128xf32>
    tpu.vector_store %arg10[%c1_42, %c0_43, %c0_44], %90 {strides = array<i32>} : memref<2x2x128xf32, #tpu.memory_space<vmem>>, vector<1x2x128xf32>,
    return
  }
}

</mosaic_0001>

<llo_original>
// kernel: _decoder_step.1
$region0: #{_decoder_step.1}
  #allocation0 [shape = 'u32[]', space=smem, size = 0x4, offset = 0x4, fixed_abs, tag = 'smem constant byte address 0x4 - core index']
  #allocation1 [shape = 'u32[144,128]{1,0:T(1,128)}', space=vmem, size = 0x12000, scoped, tag = 'internal scratch']
  %s0 = inlined_call_operand.vmem [shape: f32[2,32], index: 0, kind: input, shape index: {}]
  %s1 = inlined_call_operand.vmem [shape: bf16[32,512], index: 1, kind: input, shape index: {}]
  %s2 = inlined_call_operand.hbm [shape: bf16[128,512], index: 2, kind: input, shape index: {}]
  %s3 = inlined_call_operand.vmem [shape: f32[1,512], index: 3, kind: input, shape index: {}]
  %s4 = inlined_call_operand.hbm [shape: bf16[128,512], index: 4, kind: input, shape index: {}]
  %s5 = inlined_call_operand.hbm [shape: bf16[128,512], index: 5, kind: input, shape index: {}]
  %s6 = inlined_call_operand.vmem [shape: f32[1,512], index: 6, kind: input, shape index: {}]
  %s7 = inlined_call_operand.vmem [shape: f32[2,2,128], index: 7, kind: input, shape index: {}, may-alias: {7,9}]
  %s8 = inlined_call_operand.vmem [shape: f32[2,2,128], index: 8, kind: input, shape index: {}, may-alias: {8,10}]
  %s9 = inlined_call_operand.vmem [shape: f32[2,2,128], index: 9, kind: output, shape index: {0}, may-alias: {7,9}]
  %s10 = inlined_call_operand.vmem [shape: f32[2,2,128], index: 10, kind: output, shape index: {1}, may-alias: {8,10}]
  %11 = xla_tuple %s9, %s10
  %s12 = sld [smem:[#allocation0]]
  $region66: #{_decoder_step.1} parent=0
    _
  %s14 = ssub.s32 1, %s12
  %s15 = scalar_select 0, %s14, %s12
  $region1: #{_decoder_step.1} parent=0
    #allocation2 [shape = 'u8[131072]{0}', space=vmem, size = 0x20000, scoped, tag = 'input window, operand 2, single buffered']
    #allocation3 [shape = 's32[1]{0}', space=sflag, size = 0x4, scoped, tag = 'scoped memory for _decoder_step.1']
    #allocation4 [shape = 'u8[131072]{0}', space=vmem, size = 0x20000, scoped, tag = 'input window, operand 4, single buffered']
    #allocation5 [shape = 's32[1]{0}', space=sflag, size = 0x4, scoped, tag = 'scoped memory for _decoder_step.1']
    #allocation6 [shape = 'u8[131072]{0}', space=vmem, size = 0x20000, scoped, tag = 'input window, operand 5, single buffered']
    %16 = vsyncpa [#allocation3], 0
    %17 = vsyncpa [#allocation5], 0
    // Predicated region
    $region2: #{_decoder_step.1} parent=1 // pred_check
      _
    $region3: #{_decoder_step.1} parent=1 // pred_check_branch
      %19 = sbr.rel (0) target = $region5
    $region4: #{_decoder_step.1} parent=1 // pred_region
      _
    $region5: #{_decoder_step.1} parent=1 // pred_fallthru
      _
    // Predicated region
    $region6: #{_decoder_step.1} parent=1 // pred_check
      _
    $region7: #{_decoder_step.1} parent=1 // pred_check_branch
      %21 = sbr.rel (0) target = $region9
    $region8: #{_decoder_step.1} parent=1 // pred_region
      _
    $region9: #{_decoder_step.1} parent=1 // pred_fallthru
      _
    // Predicated region
    $region10: #{_decoder_step.1} parent=1 // pred_check
      _
    $region11: #{_decoder_step.1} parent=1 // pred_check_branch
      %23 = sbr.rel (0) target = $region13
    $region12: #{_decoder_step.1} parent=1 // pred_region
      %s25 = ssub.s32 4096, 4096
      %26 = vsyncadd [#allocation3], %s25
      %s27 = sshll.u32 [#allocation2], 4
      %s28 = int_to_ptr.vmem [resolvable:$true] %s27
      %33 = dma.hbm_to_vmem [thread:$0]  %s2, 4096, %s28, [#allocation3], 256, 256, 16
    $region13: #{_decoder_step.1} parent=1 // pred_fallthru
      _
    // Predicated region
    $region14: #{_decoder_step.1} parent=1 // pred_check
      _
    $region15: #{_decoder_step.1} parent=1 // pred_check_branch
      %35 = sbr.rel (0) target = $region17
    $region16: #{_decoder_step.1} parent=1 // pred_region
      _
    $region17: #{_decoder_step.1} parent=1 // pred_fallthru
      _
    // Predicated region
    $region18: #{_decoder_step.1} parent=1 // pred_check
      _
    $region19: #{_decoder_step.1} parent=1 // pred_check_branch
      %37 = sbr.rel (0) target = $region21
    $region20: #{_decoder_step.1} parent=1 // pred_region
      %s39 = ssub.s32 4096, 4096
      %40 = vsyncadd [#allocation5], %s39
      %s41 = sshll.u32 [#allocation4], 4
      %s42 = int_to_ptr.vmem [resolvable:$true] %s41
      %47 = dma.hbm_to_vmem [thread:$0]  %s4, 4096, %s42, [#allocation5], 256, 256, 16
    $region21: #{_decoder_step.1} parent=1 // pred_fallthru
      _
    // Predicated region
    $region22: #{_decoder_step.1} parent=1 // pred_check
      _
    $region23: #{_decoder_step.1} parent=1 // pred_check_branch
      %49 = sbr.rel (0) target = $region25
    $region24: #{_decoder_step.1} parent=1 // pred_region
      %s51 = ssub.s32 4096, 4096
      %52 = vsyncadd [#allocation5], %s51
      %s53 = sshll.u32 [#allocation6], 4
      %s54 = int_to_ptr.vmem [resolvable:$true] %s53
      %59 = dma.hbm_to_vmem [thread:$0]  %s5, 4096, %s54, [#allocation5], 256, 256, 16
    $region25: #{_decoder_step.1} parent=1 // pred_fallthru
      _
    // Predicated region
    $region26: #{_decoder_step.1} parent=1 // pred_check
      _
    $region27: #{_decoder_step.1} parent=1 // pred_check_branch
      %61 = sbr.rel (0) target = $region29
    $region28: #{_decoder_step.1} parent=1 // pred_region
      _
    $region29: #{_decoder_step.1} parent=1 // pred_fallthru
      _
    // Predicated region
    $region30: #{_decoder_step.1} parent=1 // pred_check
      _
    $region31: #{_decoder_step.1} parent=1 // pred_check_branch
      %63 = sbr.rel (0) target = $region33
    $region32: #{_decoder_step.1} parent=1 // pred_region
      _
    $region33: #{_decoder_step.1} parent=1 // pred_fallthru
      _
    // Predicated region
    $region34: #{_decoder_step.1} parent=1 // pred_check
      _
    $region35: #{_decoder_step.1} parent=1 // pred_check_branch
      %65 = sbr.rel (0) target = $region37
    $region36: #{_decoder_step.1} parent=1 // pred_region
      _
    $region37: #{_decoder_step.1} parent=1 // pred_fallthru
      _
    // Predicated region
    $region38: #{_decoder_step.1} parent=1 // pred_check
      _
    $region39: #{_decoder_step.1} parent=1 // pred_check_branch
      %67 = sbr.rel (0) target = $region41
    $region40: #{_decoder_step.1} parent=1 // pred_region
      %68 = dma.done [#allocation3], 4096
    $region41: #{_decoder_step.1} parent=1 // pred_fallthru
      _
    // Predicated region
    $region42: #{_decoder_step.1} parent=1 // pred_check
      _
    $region43: #{_decoder_step.1} parent=1 // pred_check_branch
      %70 = sbr.rel (0) target = $region45
    $region44: #{_decoder_step.1} parent=1 // pred_region
      %71 = dma.done [#allocation5], 4096
    $region45: #{_decoder_step.1} parent=1 // pred_fallthru
      _
    // Predicated region
    $region46: #{_decoder_step.1} parent=1 // pred_check
      _
    $region47: #{_decoder_step.1} parent=1 // pred_check_branch
      %73 = sbr.rel (0) target = $region49
    $region48: #{_decoder_step.1} parent=1 // pred_region
      %74 = dma.done [#allocation5], 4096
    $region49: #{_decoder_step.1} parent=1 // pred_fallthru
      _
    %v76 = vld [vmem:[%s0] sm:$0x3]
    %v77 = vld [vmem:[%s1] sm:$0xff]
    %v78 = vld [vmem:[%s1 + $0x8] sm:$0xff]
    %v79 = vld [vmem:[%s1 + $0x10] sm:$0xff]
    %v80 = vld [vmem:[%s1 + $0x18] sm:$0xff]
    %v81 = vld [vmem:[%s1 + $0x20] sm:$0xff]
    %v82 = vld [vmem:[%s1 + $0x28] sm:$0xff]
    %v83 = vld [vmem:[%s1 + $0x30] sm:$0xff]
    %v84 = vld [vmem:[%s1 + $0x38] sm:$0xff]
    %v85 = vld [vmem:[#allocation2] sm:$0xff]
    %v86 = vld [vmem:[#allocation2 + $0x8] sm:$0xff]
    %v87 = vld [vmem:[#allocation2 + $0x10] sm:$0xff]
    %v88 = vld [vmem:[#allocation2 + $0x18] sm:$0xff]
    %v89 = vld [vmem:[#allocation2 + $0x20] sm:$0xff]
    %v90 = vld [vmem:[#allocation2 + $0x28] sm:$0xff]
    %v91 = vld [vmem:[#allocation2 + $0x30] sm:$0xff]
    %v92 = vld [vmem:[#allocation2 + $0x38] sm:$0xff]
    %v93 = vld [vmem:[#allocation2 + $0x40] sm:$0xff]
    %v94 = vld [vmem:[#allocation2 + $0x48] sm:$0xff]
    %v95 = vld [vmem:[#allocation2 + $0x50] sm:$0xff]
    %v96 = vld [vmem:[#allocation2 + $0x58] sm:$0xff]
    %v97 = vld [vmem:[#allocation2 + $0x60] sm:$0xff]
    %v98 = vld [vmem:[#allocation2 + $0x68] sm:$0xff]
    %v99 = vld [vmem:[#allocation2 + $0x70] sm:$0xff]
    %v100 = vld [vmem:[#allocation2 + $0x78] sm:$0xff]
    %v101 = vld [vmem:[#allocation2 + $0x80] sm:$0xff]
    %v102 = vld [vmem:[#allocation2 + $0x88] sm:$0xff]
    %v103 = vld [vmem:[#allocation2 + $0x90] sm:$0xff]
    %v104 = vld [vmem:[#allocation2 + $0x98] sm:$0xff]
    %v105 = vld [vmem:[#allocation2 + $0xa0] sm:$0xff]
    %v106 = vld [vmem:[#allocation2 + $0xa8] sm:$0xff]
    %v107 = vld [vmem:[#allocation2 + $0xb0] sm:$0xff]
    %v108 = vld [vmem:[#allocation2 + $0xb8] sm:$0xff]
    %v109 = vld [vmem:[#allocation2 + $0xc0] sm:$0xff]
    %v110 = vld [vmem:[#allocation2 + $0xc8] sm:$0xff]
    %v111 = vld [vmem:[#allocation2 + $0xd0] sm:$0xff]
    %v112 = vld [vmem:[#allocation2 + $0xd8] sm:$0xff]
    %v113 = vld [vmem:[#allocation2 + $0xe0] sm:$0xff]
    %v114 = vld [vmem:[#allocation2 + $0xe8] sm:$0xff]
    %v115 = vld [vmem:[#allocation2 + $0xf0] sm:$0xff]
    %v116 = vld [vmem:[#allocation2 + $0xf8] sm:$0xff]
    %v117 = vld [vmem:[%s3] sm:$0xf]
    %v118 = vld [vmem:[%s7] sm:$0x3]
    %v119 = vld [vmem:[%s8] sm:$0x3]
    %v120 = vpack.c.bf16 %v76, %v76
    %v121 = vpack.c.bf16 %v118, %v118
    %v154 = vunpack.c.l.b16 %v85
    %v155 = vunpack.c.h.b16 %v85
    %v156 = vunpack.c.l.b16 %v86
    %v157 = vunpack.c.h.b16 %v86
    %v158 = vunpack.c.l.b16 %v87
    %v159 = vunpack.c.h.b16 %v87
    %v160 = vunpack.c.l.b16 %v88
    %v161 = vunpack.c.h.b16 %v88
    %v162 = vunpack.c.l.b16 %v89
    %v163 = vunpack.c.h.b16 %v89
    %v164 = vunpack.c.l.b16 %v90
    %v165 = vunpack.c.h.b16 %v90
    %v166 = vunpack.c.l.b16 %v91
    %v167 = vunpack.c.h.b16 %v91
    %v168 = vunpack.c.l.b16 %v92
    %v169 = vunpack.c.h.b16 %v92
    %v170 = vunpack.c.l.b16 %v93
    %v171 = vunpack.c.h.b16 %v93
    %v172 = vunpack.c.l.b16 %v94
    %v173 = vunpack.c.h.b16 %v94
    %v174 = vunpack.c.l.b16 %v95
    %v175 = vunpack.c.h.b16 %v95
    %v176 = vunpack.c.l.b16 %v96
    %v177 = vunpack.c.h.b16 %v96
    %v178 = vunpack.c.l.b16 %v97
    %v179 = vunpack.c.h.b16 %v97
    %v180 = vunpack.c.l.b16 %v98
    %v181 = vunpack.c.h.b16 %v98
    %v182 = vunpack.c.l.b16 %v99
    %v183 = vunpack.c.h.b16 %v99
    %v184 = vunpack.c.l.b16 %v100
    %v185 = vunpack.c.h.b16 %v100
    %v186 = vunpack.c.l.b16 %v101
    %v187 = vunpack.c.h.b16 %v101
    %v188 = vunpack.c.l.b16 %v102
    %v189 = vunpack.c.h.b16 %v102
    %v190 = vunpack.c.l.b16 %v103
    %v191 = vunpack.c.h.b16 %v103
    %v192 = vunpack.c.l.b16 %v104
    %v193 = vunpack.c.h.b16 %v104
    %v194 = vunpack.c.l.b16 %v105
    %v195 = vunpack.c.h.b16 %v105
    %v196 = vunpack.c.l.b16 %v106
    %v197 = vunpack.c.h.b16 %v106
    %v198 = vunpack.c.l.b16 %v107
    %v199 = vunpack.c.h.b16 %v107
    %v200 = vunpack.c.l.b16 %v108
    %v201 = vunpack.c.h.b16 %v108
    %v202 = vunpack.c.l.b16 %v109
    %v203 = vunpack.c.h.b16 %v109
    %v204 = vunpack.c.l.b16 %v110
    %v205 = vunpack.c.h.b16 %v110
    %v206 = vunpack.c.l.b16 %v111
    %v207 = vunpack.c.h.b16 %v111
    %v208 = vunpack.c.l.b16 %v112
    %v209 = vunpack.c.h.b16 %v112
    %v210 = vunpack.c.l.b16 %v113
    %v211 = vunpack.c.h.b16 %v113
    %v212 = vunpack.c.l.b16 %v114
    %v213 = vunpack.c.h.b16 %v114
    %v214 = vunpack.c.l.b16 %v115
    %v215 = vunpack.c.h.b16 %v115
    %v216 = vunpack.c.l.b16 %v116
    %v217 = vunpack.c.h.b16 %v116
    %v218 = vpack.c.b16 %v158, %v154
    %v219 = vpack.c.b16 %v159, %v155
    %v220 = vpack.c.b16 %v160, %v156
    %v221 = vpack.c.b16 %v161, %v157
    %v222 = vpack.c.b16 %v166, %v162
    %v223 = vpack.c.b16 %v167, %v163
    %v224 = vpack.c.b16 %v168, %v164
    %v225 = vpack.c.b16 %v169, %v165
    %v226 = vpack.c.b16 %v174, %v170
    %v227 = vpack.c.b16 %v175, %v171
    %v228 = vpack.c.b16 %v176, %v172
    %v229 = vpack.c.b16 %v177, %v173
    %v230 = vpack.c.b16 %v182, %v178
    %v231 = vpack.c.b16 %v183, %v179
    %v232 = vpack.c.b16 %v184, %v180
    %v233 = vpack.c.b16 %v185, %v181
    %v234 = vpack.c.b16 %v190, %v186
    %v235 = vpack.c.b16 %v191, %v187
    %v236 = vpack.c.b16 %v192, %v188
    %v237 = vpack.c.b16 %v193, %v189
    %v238 = vpack.c.b16 %v198, %v194
    %v239 = vpack.c.b16 %v199, %v195
    %v240 = vpack.c.b16 %v200, %v196
    %v241 = vpack.c.b16 %v201, %v197
    %v242 = vpack.c.b16 %v206, %v202
    %v243 = vpack.c.b16 %v207, %v203
    %v244 = vpack.c.b16 %v208, %v204
    %v245 = vpack.c.b16 %v209, %v205
    %v246 = vpack.c.b16 %v214, %v210
    %v247 = vpack.c.b16 %v215, %v211
    %v248 = vpack.c.b16 %v216, %v212
    %v249 = vpack.c.b16 %v217, %v213
    %282 = vmatprep.subr.bf16.mxu0 %v219
    %283 = vmatpush1.bf16.msra.mxu0 %v218
    %284 = vmatprep.subr.bf16.mxu0 %v223
    %285 = vmatpush1.bf16.msra.mxu0 %v222
    %286 = vmatprep.subr.bf16.mxu0 %v227
    %287 = vmatpush1.bf16.msra.mxu0 %v226
    %288 = vmatprep.subr.bf16.mxu0 %v231
    %289 = vmatpush1.bf16.msra.mxu0 %v230
    %290 = vmatprep.subr.bf16.mxu0 %v235
    %291 = vmatpush1.bf16.msra.mxu0 %v234
    %292 = vmatprep.subr.bf16.mxu0 %v239
    %293 = vmatpush1.bf16.msra.mxu0 %v238
    %294 = vmatprep.subr.bf16.mxu0 %v243
    %295 = vmatpush1.bf16.msra.mxu0 %v242
    %296 = vmatprep.subr.bf16.mxu0 %v247
    %297 = vmatpush1.bf16.msra.mxu0 %v246
    %298 = vmatprep.subr.bf16.mxu0 0
    %299 = vmatpush1.bf16.msra.mxu0 0
    %300 = vmatprep.subr.bf16.mxu0 0
    %301 = vmatpush1.bf16.msra.mxu0 0
    %302 = vmatprep.subr.bf16.mxu0 0
    %303 = vmatpush1.bf16.msra.mxu0 0
    %304 = vmatprep.subr.bf16.mxu0 0
    %305 = vmatpush1.bf16.msra.mxu0 0
    %306 = vmatprep.subr.bf16.mxu0 0
    %307 = vmatpush1.bf16.msra.mxu0 0
    %308 = vmatprep.subr.bf16.mxu0 0
    %309 = vmatpush1.bf16.msra.mxu0 0
    %310 = vmatprep.subr.bf16.mxu0 0
    %311 = vmatpush1.bf16.msra.mxu0 0
    %312 = vmatprep.subr.bf16.mxu0 0
    %313 = vmatpush1.bf16.msra.mxu0 0
    %314 = vmatprep.mubr.bf16.mxu0 0
    %315 = vmatmul.mubr.bf16.gmra.mrb[0].mxu0 %v121
    %v316 = vpop.f32.mrb[0].mxu0
    %v317 = vadd.f32 0.0, %v316
    %v318 = vpop.f32.mrb[0].mxu0
    %v319 = vadd.f32 0.0, %v318
    %v320 = vpop.f32.mrb[0].mxu0
    %v321 = vpop.f32.mrb[0].mxu0
    %322 = vdwg.mxu0
    %323 = vmatprep.subr.bf16.mxu0 %v221
    %324 = vmatpush1.bf16.msra.mxu0 %v220
    %325 = vmatprep.subr.bf16.mxu0 %v225
    %326 = vmatpush1.bf16.msra.mxu0 %v224
    %327 = vmatprep.subr.bf16.mxu0 %v229
    %328 = vmatpush1.bf16.msra.mxu0 %v228
    %329 = vmatprep.subr.bf16.mxu0 %v233
    %330 = vmatpush1.bf16.msra.mxu0 %v232
    %331 = vmatprep.subr.bf16.mxu0 %v237
    %332 = vmatpush1.bf16.msra.mxu0 %v236
    %333 = vmatprep.subr.bf16.mxu0 %v241
    %334 = vmatpush1.bf16.msra.mxu0 %v240
    %335 = vmatprep.subr.bf16.mxu0 %v245
    %336 = vmatpush1.bf16.msra.mxu0 %v244
    %337 = vmatprep.subr.bf16.mxu0 %v249
    %338 = vmatpush1.bf16.msra.mxu0 %v248
    %339 = vmatprep.subr.bf16.mxu0 0
    %340 = vmatpush1.bf16.msra.mxu0 0
    %341 = vmatprep.subr.bf16.mxu0 0
    %342 = vmatpush1.bf16.msra.mxu0 0
    %343 = vmatprep.subr.bf16.mxu0 0
    %344 = vmatpush1.bf16.msra.mxu0 0
    %345 = vmatprep.subr.bf16.mxu0 0
    %346 = vmatpush1.bf16.msra.mxu0 0
    %347 = vmatprep.subr.bf16.mxu0 0
    %348 = vmatpush1.bf16.msra.mxu0 0
    %349 = vmatprep.subr.bf16.mxu0 0
    %350 = vmatpush1.bf16.msra.mxu0 0
    %351 = vmatprep.subr.bf16.mxu0 0
    %352 = vmatpush1.bf16.msra.mxu0 0
    %353 = vmatprep.subr.bf16.mxu0 0
    %354 = vmatpush1.bf16.msra.mxu0 0
    %355 = vmatprep.mubr.bf16.mxu0 0
    %356 = vmatmul.mubr.bf16.gmra.mrb[0].mxu0 %v121
    %v357 = vpop.f32.mrb[0].mxu0
    %v358 = vadd.f32 0.0, %v357
    %v359 = vpop.f32.mrb[0].mxu0
    %v360 = vadd.f32 0.0, %v359
    %v361 = vpop.f32.mrb[0].mxu0
    %v362 = vpop.f32.mrb[0].mxu0
    %363 = vdwg.mxu0
    %v372 = vunpack.c.l.b16 %v77
    %v373 = vunpack.c.h.b16 %v77
    %v374 = vunpack.c.l.b16 %v78
    %v375 = vunpack.c.h.b16 %v78
    %v376 = vunpack.c.l.b16 %v79
    %v377 = vunpack.c.h.b16 %v79
    %v378 = vunpack.c.l.b16 %v80
    %v379 = vunpack.c.h.b16 %v80
    %v380 = vunpack.c.l.b16 %v81
    %v381 = vunpack.c.h.b16 %v81
    %v382 = vunpack.c.l.b16 %v82
    %v383 = vunpack.c.h.b16 %v82
    %v384 = vunpack.c.l.b16 %v83
    %v385 = vunpack.c.h.b16 %v83
    %v386 = vunpack.c.l.b16 %v84
    %v387 = vunpack.c.h.b16 %v84
    %v388 = vpack.c.b16 %v376, %v372
    %v389 = vpack.c.b16 %v377, %v373
    %v390 = vpack.c.b16 %v378, %v374
    %v391 = vpack.c.b16 %v379, %v375
    %v392 = vpack.c.b16 %v384, %v380
    %v393 = vpack.c.b16 %v385, %v381
    %v394 = vpack.c.b16 %v386, %v382
    %v395 = vpack.c.b16 %v387, %v383
    %vm404 = vcmask 261120
    %v406 = vsel %vm404, %v120, 0
    %408 = vmatprep.subr.bf16.mxu0 %v389
    %409 = vmatpush1.bf16.msra.mxu0 %v388
    %410 = vmatprep.subr.bf16.mxu0 %v393
    %411 = vmatpush1.bf16.msra.mxu0 %v392
    %412 = vmatprep.subr.bf16.mxu0 0
    %413 = vmatpush1.bf16.msra.mxu0 0
    %414 = vmatprep.subr.bf16.mxu0 0
    %415 = vmatpush1.bf16.msra.mxu0 0
    %416 = vmatprep.subr.bf16.mxu0 0
    %417 = vmatpush1.bf16.msra.mxu0 0
    %418 = vmatprep.subr.bf16.mxu0 0
    %419 = vmatpush1.bf16.msra.mxu0 0
    %420 = vmatprep.subr.bf16.mxu0 0
    %421 = vmatpush1.bf16.msra.mxu0 0
    %422 = vmatprep.subr.bf16.mxu0 0
    %423 = vmatpush1.bf16.msra.mxu0 0
    %424 = vmatprep.subr.bf16.mxu0 0
    %425 = vmatpush1.bf16.msra.mxu0 0
    %426 = vmatprep.subr.bf16.mxu0 0
    %427 = vmatpush1.bf16.msra.mxu0 0
    %428 = vmatprep.subr.bf16.mxu0 0
    %429 = vmatpush1.bf16.msra.mxu0 0
    %430 = vmatprep.subr.bf16.mxu0 0
    %431 = vmatpush1.bf16.msra.mxu0 0
    %432 = vmatprep.subr.bf16.mxu0 0
    %433 = vmatpush1.bf16.msra.mxu0 0
    %434 = vmatprep.subr.bf16.mxu0 0
    %435 = vmatpush1.bf16.msra.mxu0 0
    %436 = vmatprep.subr.bf16.mxu0 0
    %437 = vmatpush1.bf16.msra.mxu0 0
    %438 = vmatprep.subr.bf16.mxu0 0
    %439 = vmatpush1.bf16.msra.mxu0 0
    %440 = vmatprep.mubr.bf16.mxu0 0
    %441 = vmatmul.mubr.bf16.gmra.mrb[0].mxu0 %v406
    %v442 = vpop.f32.mrb[0].mxu0
    %v443 = vadd.f32 %v317, %v442
    %v444 = vpop.f32.mrb[0].mxu0
    %v445 = vadd.f32 %v319, %v444
    %v446 = vpop.f32.mrb[0].mxu0
    %v447 = vpop.f32.mrb[0].mxu0
    %448 = vdwg.mxu0
    %449 = vmatprep.subr.bf16.mxu0 %v391
    %450 = vmatpush1.bf16.msra.mxu0 %v390
    %451 = vmatprep.subr.bf16.mxu0 %v395
    %452 = vmatpush1.bf16.msra.mxu0 %v394
    %453 = vmatprep.subr.bf16.mxu0 0
    %454 = vmatpush1.bf16.msra.mxu0 0
    %455 = vmatprep.subr.bf16.mxu0 0
    %456 = vmatpush1.bf16.msra.mxu0 0
    %457 = vmatprep.subr.bf16.mxu0 0
    %458 = vmatpush1.bf16.msra.mxu0 0
    %459 = vmatprep.subr.bf16.mxu0 0
    %460 = vmatpush1.bf16.msra.mxu0 0
    %461 = vmatprep.subr.bf16.mxu0 0
    %462 = vmatpush1.bf16.msra.mxu0 0
    %463 = vmatprep.subr.bf16.mxu0 0
    %464 = vmatpush1.bf16.msra.mxu0 0
    %465 = vmatprep.subr.bf16.mxu0 0
    %466 = vmatpush1.bf16.msra.mxu0 0
    %467 = vmatprep.subr.bf16.mxu0 0
    %468 = vmatpush1.bf16.msra.mxu0 0
    %469 = vmatprep.subr.bf16.mxu0 0
    %470 = vmatpush1.bf16.msra.mxu0 0
    %471 = vmatprep.subr.bf16.mxu0 0
    %472 = vmatpush1.bf16.msra.mxu0 0
    %473 = vmatprep.subr.bf16.mxu0 0
    %474 = vmatpush1.bf16.msra.mxu0 0
    %475 = vmatprep.subr.bf16.mxu0 0
    %476 = vmatpush1.bf16.msra.mxu0 0
    %477 = vmatprep.subr.bf16.mxu0 0
    %478 = vmatpush1.bf16.msra.mxu0 0
    %479 = vmatprep.subr.bf16.mxu0 0
    %480 = vmatpush1.bf16.msra.mxu0 0
    %481 = vmatprep.mubr.bf16.mxu0 0
    %482 = vmatmul.mubr.bf16.gmra.mrb[0].mxu0 %v406
    %v483 = vpop.f32.mrb[0].mxu0
    %v484 = vadd.f32 %v358, %v483
    %v485 = vpop.f32.mrb[0].mxu0
    %v486 = vadd.f32 %v360, %v485
    %v487 = vpop.f32.mrb[0].mxu0
    %v488 = vpop.f32.mrb[0].mxu0
    %489 = vdwg.mxu0
    %v491 = vlaneseq
    %v492 = vshrl.u32 %v491, 7
    %v493 = vsub.s32 0, %v492
    %v494 = vrot.slane %v117, %v493
    %v495 = vlaneseq
    %v496 = vshrl.u32 %v495, 7
    %v497 = vsub.s32 1, %v496
    %v498 = vrot.slane %v117, %v497
    %v499 = vlaneseq
    %v500 = vshrl.u32 %v499, 7
    %v501 = vsub.s32 2, %v500
    %v502 = vrot.slane %v117, %v501
    %v503 = vlaneseq
    %v504 = vshrl.u32 %v503, 7
    %v505 = vsub.s32 3, %v504
    %v506 = vrot.slane %v117, %v505
    %v511 = vadd.f32 %v443, %v494
    %v512 = vadd.f32 %v445, %v498
    %v513 = vadd.f32 %v484, %v502
    %v514 = vadd.f32 %v486, %v506
    %v515 = vxor.u32 %v511, 2147483648
    %v516 = vmul.f32 %v515, 1.442695
    %v517 = vpow.pop %v516
    %v518 = vadd.f32 %v517, 1.0
    %v519 = vrcp.pop %v518
    %v520 = vmul.f32 1.0, %v519
    %v521 = vxor.u32 %v512, 2147483648
    %v522 = vmul.f32 %v521, 1.442695
    %v523 = vpow.pop %v522
    %v524 = vadd.f32 %v523, 1.0
    %v525 = vrcp.pop %v524
    %v526 = vmul.f32 1.0, %v525
    %v527 = vtanh.pop %v513
    %v528 = vxor.u32 %v514, 2147483648
    %v529 = vmul.f32 %v528, 1.442695
    %v530 = vpow.pop %v529
    %v531 = vadd.f32 %v530, 1.0
    %v532 = vrcp.pop %v531
    %v533 = vmul.f32 1.0, %v532
    %v534 = vmul.f32 %v526, %v119
    %v535 = vmul.f32 %v520, %v527
    %v536 = vadd.f32 %v534, %v535
    %v537 = vtanh.pop %v536
    %v538 = vmul.f32 %v533, %v537
    %539 = vst [vmem:[%s9] sm:$0x3] %v538
    %540 = vst [vmem:[%s10] sm:$0x3] %v536
    %v541 = vld [vmem:[#allocation4] sm:$0xff]
    %v542 = vld [vmem:[#allocation4 + $0x8] sm:$0xff]
    %v543 = vld [vmem:[#allocation4 + $0x10] sm:$0xff]
    %v544 = vld [vmem:[#allocation4 + $0x18] sm:$0xff]
    %v545 = vld [vmem:[#allocation4 + $0x20] sm:$0xff]
    %v546 = vld [vmem:[#allocation4 + $0x28] sm:$0xff]
    %v547 = vld [vmem:[#allocation4 + $0x30] sm:$0xff]
    %v548 = vld [vmem:[#allocation4 + $0x38] sm:$0xff]
    %v549 = vld [vmem:[#allocation4 + $0x40] sm:$0xff]
    %v550 = vld [vmem:[#allocation4 + $0x48] sm:$0xff]
    %v551 = vld [vmem:[#allocation4 + $0x50] sm:$0xff]
    %v552 = vld [vmem:[#allocation4 + $0x58] sm:$0xff]
    %v553 = vld [vmem:[#allocation4 + $0x60] sm:$0xff]
    %v554 = vld [vmem:[#allocation4 + $0x68] sm:$0xff]
    %v555 = vld [vmem:[#allocation4 + $0x70] sm:$0xff]
    %v556 = vld [vmem:[#allocation4 + $0x78] sm:$0xff]
    %v557 = vld [vmem:[#allocation4 + $0x80] sm:$0xff]
    %v558 = vld [vmem:[#allocation4 + $0x88] sm:$0xff]
    %v559 = vld [vmem:[#allocation4 + $0x90] sm:$0xff]
    %v560 = vld [vmem:[#allocation4 + $0x98] sm:$0xff]
    %v561 = vld [vmem:[#allocation4 + $0xa0] sm:$0xff]
    %v562 = vld [vmem:[#allocation4 + $0xa8] sm:$0xff]
    %v563 = vld [vmem:[#allocation4 + $0xb0] sm:$0xff]
    %v564 = vld [vmem:[#allocation4 + $0xb8] sm:$0xff]
    %v565 = vld [vmem:[#allocation4 + $0xc0] sm:$0xff]
    %v566 = vld [vmem:[#allocation4 + $0xc8] sm:$0xff]
    %v567 = vld [vmem:[#allocation4 + $0xd0] sm:$0xff]
    %v568 = vld [vmem:[#allocation4 + $0xd8] sm:$0xff]
    %v569 = vld [vmem:[#allocation4 + $0xe0] sm:$0xff]
    %v570 = vld [vmem:[#allocation4 + $0xe8] sm:$0xff]
    %v571 = vld [vmem:[#allocation4 + $0xf0] sm:$0xff]
    %v572 = vld [vmem:[#allocation4 + $0xf8] sm:$0xff]
    %v573 = vld [vmem:[#allocation6] sm:$0xff]
    %v574 = vld [vmem:[#allocation6 + $0x8] sm:$0xff]
    %v575 = vld [vmem:[#allocation6 + $0x10] sm:$0xff]
    %v576 = vld [vmem:[#allocation6 + $0x18] sm:$0xff]
    %v577 = vld [vmem:[#allocation6 + $0x20] sm:$0xff]
    %v578 = vld [vmem:[#allocation6 + $0x28] sm:$0xff]
    %v579 = vld [vmem:[#allocation6 + $0x30] sm:$0xff]
    %v580 = vld [vmem:[#allocation6 + $0x38] sm:$0xff]
    %v581 = vld [vmem:[#allocation6 + $0x40] sm:$0xff]
    %v582 = vld [vmem:[#allocation6 + $0x48] sm:$0xff]
    %v583 = vld [vmem:[#allocation6 + $0x50] sm:$0xff]
    %v584 = vld [vmem:[#allocation6 + $0x58] sm:$0xff]
    %v585 = vld [vmem:[#allocation6 + $0x60] sm:$0xff]
    %v586 = vld [vmem:[#allocation6 + $0x68] sm:$0xff]
    %v587 = vld [vmem:[#allocation6 + $0x70] sm:$0xff]
    %v588 = vld [vmem:[#allocation6 + $0x78] sm:$0xff]
    %v589 = vld [vmem:[#allocation6 + $0x80] sm:$0xff]
    %v590 = vld [vmem:[#allocation6 + $0x88] sm:$0xff]
    %v591 = vld [vmem:[#allocation6 + $0x90] sm:$0xff]
    %v592 = vld [vmem:[#allocation6 + $0x98] sm:$0xff]
    %v593 = vld [vmem:[#allocation6 + $0xa0] sm:$0xff]
    %v594 = vld [vmem:[#allocation6 + $0xa8] sm:$0xff]
    %v595 = vld [vmem:[#allocation6 + $0xb0] sm:$0xff]
    %v596 = vld [vmem:[#allocation6 + $0xb8] sm:$0xff]
    %v597 = vld [vmem:[#allocation6 + $0xc0] sm:$0xff]
    %v598 = vld [vmem:[#allocation6 + $0xc8] sm:$0xff]
    %v599 = vld [vmem:[#allocation6 + $0xd0] sm:$0xff]
    %v600 = vld [vmem:[#allocation6 + $0xd8] sm:$0xff]
    %v601 = vld [vmem:[#allocation6 + $0xe0] sm:$0xff]
    %v602 = vld [vmem:[#allocation6 + $0xe8] sm:$0xff]
    %v603 = vld [vmem:[#allocation6 + $0xf0] sm:$0xff]
    %v604 = vld [vmem:[#allocation6 + $0xf8] sm:$0xff]
    %v605 = vld [vmem:[%s6] sm:$0xf]
    %s606 = scalar_lea.vmem %s7, 2
    %v607 = vld [vmem:[%s606] sm:$0x3]
    %s608 = scalar_lea.vmem %s8, 2
    %v609 = vld [vmem:[%s608] sm:$0x3]
    %v610 = vpack.c.bf16 %v538, %v538
    %v611 = vpack.c.bf16 %v607, %v607
    %v644 = vunpack.c.l.b16 %v573
    %v645 = vunpack.c.h.b16 %v573
    %v646 = vunpack.c.l.b16 %v574
    %v647 = vunpack.c.h.b16 %v574
    %v648 = vunpack.c.l.b16 %v575
    %v649 = vunpack.c.h.b16 %v575
    %v650 = vunpack.c.l.b16 %v576
    %v651 = vunpack.c.h.b16 %v576
    %v652 = vunpack.c.l.b16 %v577
    %v653 = vunpack.c.h.b16 %v577
    %v654 = vunpack.c.l.b16 %v578
    %v655 = vunpack.c.h.b16 %v578
    %v656 = vunpack.c.l.b16 %v579
    %v657 = vunpack.c.h.b16 %v579
    %v658 = vunpack.c.l.b16 %v580
    %v659 = vunpack.c.h.b16 %v580
    %v660 = vunpack.c.l.b16 %v581
    %v661 = vunpack.c.h.b16 %v581
    %v662 = vunpack.c.l.b16 %v582
    %v663 = vunpack.c.h.b16 %v582
    %v664 = vunpack.c.l.b16 %v583
    %v665 = vunpack.c.h.b16 %v583
    %v666 = vunpack.c.l.b16 %v584
    %v667 = vunpack.c.h.b16 %v584
    %v668 = vunpack.c.l.b16 %v585
    %v669 = vunpack.c.h.b16 %v585
    %v670 = vunpack.c.l.b16 %v586
    %v671 = vunpack.c.h.b16 %v586
    %v672 = vunpack.c.l.b16 %v587
    %v673 = vunpack.c.h.b16 %v587
    %v674 = vunpack.c.l.b16 %v588
    %v675 = vunpack.c.h.b16 %v588
    %v676 = vunpack.c.l.b16 %v589
    %v677 = vunpack.c.h.b16 %v589
    %v678 = vunpack.c.l.b16 %v590
    %v679 = vunpack.c.h.b16 %v590
    %v680 = vunpack.c.l.b16 %v591
    %v681 = vunpack.c.h.b16 %v591
    %v682 = vunpack.c.l.b16 %v592
    %v683 = vunpack.c.h.b16 %v592
    %v684 = vunpack.c.l.b16 %v593
    %v685 = vunpack.c.h.b16 %v593
    %v686 = vunpack.c.l.b16 %v594
    %v687 = vunpack.c.h.b16 %v594
    %v688 = vunpack.c.l.b16 %v595
    %v689 = vunpack.c.h.b16 %v595
    %v690 = vunpack.c.l.b16 %v596
    %v691 = vunpack.c.h.b16 %v596
    %v692 = vunpack.c.l.b16 %v597
    %v693 = vunpack.c.h.b16 %v597
    %v694 = vunpack.c.l.b16 %v598
    %v695 = vunpack.c.h.b16 %v598
    %v696 = vunpack.c.l.b16 %v599
    %v697 = vunpack.c.h.b16 %v599
    %v698 = vunpack.c.l.b16 %v600
    %v699 = vunpack.c.h.b16 %v600
    %v700 = vunpack.c.l.b16 %v601
    %v701 = vunpack.c.h.b16 %v601
    %v702 = vunpack.c.l.b16 %v602
    %v703 = vunpack.c.h.b16 %v602
    %v704 = vunpack.c.l.b16 %v603
    %v705 = vunpack.c.h.b16 %v603
    %v706 = vunpack.c.l.b16 %v604
    %v707 = vunpack.c.h.b16 %v604
    %v708 = vpack.c.b16 %v648, %v644
    %v709 = vpack.c.b16 %v649, %v645
    %v710 = vpack.c.b16 %v650, %v646
    %v711 = vpack.c.b16 %v651, %v647
    %v712 = vpack.c.b16 %v656, %v652
    %v713 = vpack.c.b16 %v657, %v653
    %v714 = vpack.c.b16 %v658, %v654
    %v715 = vpack.c.b16 %v659, %v655
    %v716 = vpack.c.b16 %v664, %v660
    %v717 = vpack.c.b16 %v665, %v661
    %v718 = vpack.c.b16 %v666, %v662
    %v719 = vpack.c.b16 %v667, %v663
    %v720 = vpack.c.b16 %v672, %v668
    %v721 = vpack.c.b16 %v673, %v669
    %v722 = vpack.c.b16 %v674, %v670
    %v723 = vpack.c.b16 %v675, %v671
    %v724 = vpack.c.b16 %v680, %v676
    %v725 = vpack.c.b16 %v681, %v677
    %v726 = vpack.c.b16 %v682, %v678
    %v727 = vpack.c.b16 %v683, %v679
    %v728 = vpack.c.b16 %v688, %v684
    %v729 = vpack.c.b16 %v689, %v685
    %v730 = vpack.c.b16 %v690, %v686
    %v731 = vpack.c.b16 %v691, %v687
    %v732 = vpack.c.b16 %v696, %v692
    %v733 = vpack.c.b16 %v697, %v693
    %v734 = vpack.c.b16 %v698, %v694
    %v735 = vpack.c.b16 %v699, %v695
    %v736 = vpack.c.b16 %v704, %v700
    %v737 = vpack.c.b16 %v705, %v701
    %v738 = vpack.c.b16 %v706, %v702
    %v739 = vpack.c.b16 %v707, %v703
    %772 = vmatprep.subr.bf16.mxu0 %v709
    %773 = vmatpush1.bf16.msra.mxu0 %v708
    %774 = vmatprep.subr.bf16.mxu0 %v713
    %775 = vmatpush1.bf16.msra.mxu0 %v712
    %776 = vmatprep.subr.bf16.mxu0 %v717
    %777 = vmatpush1.bf16.msra.mxu0 %v716
    %778 = vmatprep.subr.bf16.mxu0 %v721
    %779 = vmatpush1.bf16.msra.mxu0 %v720
    %780 = vmatprep.subr.bf16.mxu0 %v725
    %781 = vmatpush1.bf16.msra.mxu0 %v724
    %782 = vmatprep.subr.bf16.mxu0 %v729
    %783 = vmatpush1.bf16.msra.mxu0 %v728
    %784 = vmatprep.subr.bf16.mxu0 %v733
    %785 = vmatpush1.bf16.msra.mxu0 %v732
    %786 = vmatprep.subr.bf16.mxu0 %v737
    %787 = vmatpush1.bf16.msra.mxu0 %v736
    %788 = vmatprep.subr.bf16.mxu0 0
    %789 = vmatpush1.bf16.msra.mxu0 0
    %790 = vmatprep.subr.bf16.mxu0 0
    %791 = vmatpush1.bf16.msra.mxu0 0
    %792 = vmatprep.subr.bf16.mxu0 0
    %793 = vmatpush1.bf16.msra.mxu0 0
    %794 = vmatprep.subr.bf16.mxu0 0
    %795 = vmatpush1.bf16.msra.mxu0 0
    %796 = vmatprep.subr.bf16.mxu0 0
    %797 = vmatpush1.bf16.msra.mxu0 0
    %798 = vmatprep.subr.bf16.mxu0 0
    %799 = vmatpush1.bf16.msra.mxu0 0
    %800 = vmatprep.subr.bf16.mxu0 0
    %801 = vmatpush1.bf16.msra.mxu0 0
    %802 = vmatprep.subr.bf16.mxu0 0
    %803 = vmatpush1.bf16.msra.mxu0 0
    %804 = vmatprep.mubr.bf16.mxu0 0
    %805 = vmatmul.mubr.bf16.gmra.mrb[0].mxu0 %v611
    %v806 = vpop.f32.mrb[0].mxu0
    %v807 = vadd.f32 0.0, %v806
    %v808 = vpop.f32.mrb[0].mxu0
    %v809 = vadd.f32 0.0, %v808
    %v810 = vpop.f32.mrb[0].mxu0
    %v811 = vpop.f32.mrb[0].mxu0
    %812 = vdwg.mxu0
    %813 = vmatprep.subr.bf16.mxu0 %v711
    %814 = vmatpush1.bf16.msra.mxu0 %v710
    %815 = vmatprep.subr.bf16.mxu0 %v715
    %816 = vmatpush1.bf16.msra.mxu0 %v714
    %817 = vmatprep.subr.bf16.mxu0 %v719
    %818 = vmatpush1.bf16.msra.mxu0 %v718
    %819 = vmatprep.subr.bf16.mxu0 %v723
    %820 = vmatpush1.bf16.msra.mxu0 %v722
    %821 = vmatprep.subr.bf16.mxu0 %v727
    %822 = vmatpush1.bf16.msra.mxu0 %v726
    %823 = vmatprep.subr.bf16.mxu0 %v731
    %824 = vmatpush1.bf16.msra.mxu0 %v730
    %825 = vmatprep.subr.bf16.mxu0 %v735
    %826 = vmatpush1.bf16.msra.mxu0 %v734
    %827 = vmatprep.subr.bf16.mxu0 %v739
    %828 = vmatpush1.bf16.msra.mxu0 %v738
    %829 = vmatprep.subr.bf16.mxu0 0
    %830 = vmatpush1.bf16.msra.mxu0 0
    %831 = vmatprep.subr.bf16.mxu0 0
    %832 = vmatpush1.bf16.msra.mxu0 0
    %833 = vmatprep.subr.bf16.mxu0 0
    %834 = vmatpush1.bf16.msra.mxu0 0
    %835 = vmatprep.subr.bf16.mxu0 0
    %836 = vmatpush1.bf16.msra.mxu0 0
    %837 = vmatprep.subr.bf16.mxu0 0
    %838 = vmatpush1.bf16.msra.mxu0 0
    %839 = vmatprep.subr.bf16.mxu0 0
    %840 = vmatpush1.bf16.msra.mxu0 0
    %841 = vmatprep.subr.bf16.mxu0 0
    %842 = vmatpush1.bf16.msra.mxu0 0
    %843 = vmatprep.subr.bf16.mxu0 0
    %844 = vmatpush1.bf16.msra.mxu0 0
    %845 = vmatprep.mubr.bf16.mxu0 0
    %846 = vmatmul.mubr.bf16.gmra.mrb[0].mxu0 %v611
    %v847 = vpop.f32.mrb[0].mxu0
    %v848 = vadd.f32 0.0, %v847
    %v849 = vpop.f32.mrb[0].mxu0
    %v850 = vadd.f32 0.0, %v849
    %v851 = vpop.f32.mrb[0].mxu0
    %v852 = vpop.f32.mrb[0].mxu0
    %853 = vdwg.mxu0
    %v886 = vunpack.c.l.b16 %v541
    %v887 = vunpack.c.h.b16 %v541
    %v888 = vunpack.c.l.b16 %v542
    %v889 = vunpack.c.h.b16 %v542
    %v890 = vunpack.c.l.b16 %v543
    %v891 = vunpack.c.h.b16 %v543
    %v892 = vunpack.c.l.b16 %v544
    %v893 = vunpack.c.h.b16 %v544
    %v894 = vunpack.c.l.b16 %v545
    %v895 = vunpack.c.h.b16 %v545
    %v896 = vunpack.c.l.b16 %v546
    %v897 = vunpack.c.h.b16 %v546
    %v898 = vunpack.c.l.b16 %v547
    %v899 = vunpack.c.h.b16 %v547
    %v900 = vunpack.c.l.b16 %v548
    %v901 = vunpack.c.h.b16 %v548
    %v902 = vunpack.c.l.b16 %v549
    %v903 = vunpack.c.h.b16 %v549
    %v904 = vunpack.c.l.b16 %v550
    %v905 = vunpack.c.h.b16 %v550
    %v906 = vunpack.c.l.b16 %v551
    %v907 = vunpack.c.h.b16 %v551
    %v908 = vunpack.c.l.b16 %v552
    %v909 = vunpack.c.h.b16 %v552
    %v910 = vunpack.c.l.b16 %v553
    %v911 = vunpack.c.h.b16 %v553
    %v912 = vunpack.c.l.b16 %v554
    %v913 = vunpack.c.h.b16 %v554
    %v914 = vunpack.c.l.b16 %v555
    %v915 = vunpack.c.h.b16 %v555
    %v916 = vunpack.c.l.b16 %v556
    %v917 = vunpack.c.h.b16 %v556
    %v918 = vunpack.c.l.b16 %v557
    %v919 = vunpack.c.h.b16 %v557
    %v920 = vunpack.c.l.b16 %v558
    %v921 = vunpack.c.h.b16 %v558
    %v922 = vunpack.c.l.b16 %v559
    %v923 = vunpack.c.h.b16 %v559
    %v924 = vunpack.c.l.b16 %v560
    %v925 = vunpack.c.h.b16 %v560
    %v926 = vunpack.c.l.b16 %v561
    %v927 = vunpack.c.h.b16 %v561
    %v928 = vunpack.c.l.b16 %v562
    %v929 = vunpack.c.h.b16 %v562
    %v930 = vunpack.c.l.b16 %v563
    %v931 = vunpack.c.h.b16 %v563
    %v932 = vunpack.c.l.b16 %v564
    %v933 = vunpack.c.h.b16 %v564
    %v934 = vunpack.c.l.b16 %v565
    %v935 = vunpack.c.h.b16 %v565
    %v936 = vunpack.c.l.b16 %v566
    %v937 = vunpack.c.h.b16 %v566
    %v938 = vunpack.c.l.b16 %v567
    %v939 = vunpack.c.h.b16 %v567
    %v940 = vunpack.c.l.b16 %v568
    %v941 = vunpack.c.h.b16 %v568
    %v942 = vunpack.c.l.b16 %v569
    %v943 = vunpack.c.h.b16 %v569
    %v944 = vunpack.c.l.b16 %v570
    %v945 = vunpack.c.h.b16 %v570
    %v946 = vunpack.c.l.b16 %v571
    %v947 = vunpack.c.h.b16 %v571
    %v948 = vunpack.c.l.b16 %v572
    %v949 = vunpack.c.h.b16 %v572
    %v950 = vpack.c.b16 %v890, %v886
    %v951 = vpack.c.b16 %v891, %v887
    %v952 = vpack.c.b16 %v892, %v888
    %v953 = vpack.c.b16 %v893, %v889
    %v954 = vpack.c.b16 %v898, %v894
    %v955 = vpack.c.b16 %v899, %v895
    %v956 = vpack.c.b16 %v900, %v896
    %v957 = vpack.c.b16 %v901, %v897
    %v958 = vpack.c.b16 %v906, %v902
    %v959 = vpack.c.b16 %v907, %v903
    %v960 = vpack.c.b16 %v908, %v904
    %v961 = vpack.c.b16 %v909, %v905
    %v962 = vpack.c.b16 %v914, %v910
    %v963 = vpack.c.b16 %v915, %v911
    %v964 = vpack.c.b16 %v916, %v912
    %v965 = vpack.c.b16 %v917, %v913
    %v966 = vpack.c.b16 %v922, %v918
    %v967 = vpack.c.b16 %v923, %v919
    %v968 = vpack.c.b16 %v924, %v920
    %v969 = vpack.c.b16 %v925, %v921
    %v970 = vpack.c.b16 %v930, %v926
    %v971 = vpack.c.b16 %v931, %v927
    %v972 = vpack.c.b16 %v932, %v928
    %v973 = vpack.c.b16 %v933, %v929
    %v974 = vpack.c.b16 %v938, %v934
    %v975 = vpack.c.b16 %v939, %v935
    %v976 = vpack.c.b16 %v940, %v936
    %v977 = vpack.c.b16 %v941, %v937
    %v978 = vpack.c.b16 %v946, %v942
    %v979 = vpack.c.b16 %v947, %v943
    %v980 = vpack.c.b16 %v948, %v944
    %v981 = vpack.c.b16 %v949, %v945
    %1014 = vmatprep.subr.bf16.mxu0 %v951
    %1015 = vmatpush1.bf16.msra.mxu0 %v950
    %1016 = vmatprep.subr.bf16.mxu0 %v955
    %1017 = vmatpush1.bf16.msra.mxu0 %v954
    %1018 = vmatprep.subr.bf16.mxu0 %v959
    %1019 = vmatpush1.bf16.msra.mxu0 %v958
    %1020 = vmatprep.subr.bf16.mxu0 %v963
    %1021 = vmatpush1.bf16.msra.mxu0 %v962
    %1022 = vmatprep.subr.bf16.mxu0 %v967
    %1023 = vmatpush1.bf16.msra.mxu0 %v966
    %1024 = vmatprep.subr.bf16.mxu0 %v971
    %1025 = vmatpush1.bf16.msra.mxu0 %v970
    %1026 = vmatprep.subr.bf16.mxu0 %v975
    %1027 = vmatpush1.bf16.msra.mxu0 %v974
    %1028 = vmatprep.subr.bf16.mxu0 %v979
    %1029 = vmatpush1.bf16.msra.mxu0 %v978
    %1030 = vmatprep.subr.bf16.mxu0 0
    %1031 = vmatpush1.bf16.msra.mxu0 0
    %1032 = vmatprep.subr.bf16.mxu0 0
    %1033 = vmatpush1.bf16.msra.mxu0 0
    %1034 = vmatprep.subr.bf16.mxu0 0
    %1035 = vmatpush1.bf16.msra.mxu0 0
    %1036 = vmatprep.subr.bf16.mxu0 0
    %1037 = vmatpush1.bf16.msra.mxu0 0
    %1038 = vmatprep.subr.bf16.mxu0 0
    %1039 = vmatpush1.bf16.msra.mxu0 0
    %1040 = vmatprep.subr.bf16.mxu0 0
    %1041 = vmatpush1.bf16.msra.mxu0 0
    %1042 = vmatprep.subr.bf16.mxu0 0
    %1043 = vmatpush1.bf16.msra.mxu0 0
    %1044 = vmatprep.subr.bf16.mxu0 0
    %1045 = vmatpush1.bf16.msra.mxu0 0
    %1046 = vmatprep.mubr.bf16.mxu0 0
    %1047 = vmatmul.mubr.bf16.gmra.mrb[0].mxu0 %v610
    %v1048 = vpop.f32.mrb[0].mxu0
    %v1049 = vadd.f32 %v807, %v1048
    %v1050 = vpop.f32.mrb[0].mxu0
    %v1051 = vadd.f32 %v809, %v1050
    %v1052 = vpop.f32.mrb[0].mxu0
    %v1053 = vpop.f32.mrb[0].mxu0
    %1054 = vdwg.mxu0
    %1055 = vmatprep.subr.bf16.mxu0 %v953
    %1056 = vmatpush1.bf16.msra.mxu0 %v952
    %1057 = vmatprep.subr.bf16.mxu0 %v957
    %1058 = vmatpush1.bf16.msra.mxu0 %v956
    %1059 = vmatprep.subr.bf16.mxu0 %v961
    %1060 = vmatpush1.bf16.msra.mxu0 %v960
    %1061 = vmatprep.subr.bf16.mxu0 %v965
    %1062 = vmatpush1.bf16.msra.mxu0 %v964
    %1063 = vmatprep.subr.bf16.mxu0 %v969
    %1064 = vmatpush1.bf16.msra.mxu0 %v968
    %1065 = vmatprep.subr.bf16.mxu0 %v973
    %1066 = vmatpush1.bf16.msra.mxu0 %v972
    %1067 = vmatprep.subr.bf16.mxu0 %v977
    %1068 = vmatpush1.bf16.msra.mxu0 %v976
    %1069 = vmatprep.subr.bf16.mxu0 %v981
    %1070 = vmatpush1.bf16.msra.mxu0 %v980
    %1071 = vmatprep.subr.bf16.mxu0 0
    %1072 = vmatpush1.bf16.msra.mxu0 0
    %1073 = vmatprep.subr.bf16.mxu0 0
    %1074 = vmatpush1.bf16.msra.mxu0 0
    %1075 = vmatprep.subr.bf16.mxu0 0
    %1076 = vmatpush1.bf16.msra.mxu0 0
    %1077 = vmatprep.subr.bf16.mxu0 0
    %1078 = vmatpush1.bf16.msra.mxu0 0
    %1079 = vmatprep.subr.bf16.mxu0 0
    %1080 = vmatpush1.bf16.msra.mxu0 0
    %1081 = vmatprep.subr.bf16.mxu0 0
    %1082 = vmatpush1.bf16.msra.mxu0 0
    %1083 = vmatprep.subr.bf16.mxu0 0
    %1084 = vmatpush1.bf16.msra.mxu0 0
    %1085 = vmatprep.subr.bf16.mxu0 0
    %1086 = vmatpush1.bf16.msra.mxu0 0
    %1087 = vmatprep.mubr.bf16.mxu0 0
    %1088 = vmatmul.mubr.bf16.gmra.mrb[0].mxu0 %v610
    %v1089 = vpop.f32.mrb[0].mxu0
    %v1090 = vadd.f32 %v848, %v1089
    %v1091 = vpop.f32.mrb[0].mxu0
    %v1092 = vadd.f32 %v850, %v1091
    %v1093 = vpop.f32.mrb[0].mxu0
    %v1094 = vpop.f32.mrb[0].mxu0
    %1095 = vdwg.mxu0
    %v1097 = vlaneseq
    %v1098 = vshrl.u32 %v1097, 7
    %v1099 = vsub.s32 0, %v1098
    %v1100 = vrot.slane %v605, %v1099
    %v1101 = vlaneseq
    %v1102 = vshrl.u32 %v1101, 7
    %v1103 = vsub.s32 1, %v1102
    %v1104 = vrot.slane %v605, %v1103
    %v1105 = vlaneseq
    %v1106 = vshrl.u32 %v1105, 7
    %v1107 = vsub.s32 2, %v1106
    %v1108 = vrot.slane %v605, %v1107
    %v1109 = vlaneseq
    %v1110 = vshrl.u32 %v1109, 7
    %v1111 = vsub.s32 3, %v1110
    %v1112 = vrot.slane %v605, %v1111
    %v1117 = vadd.f32 %v1049, %v1100
    %v1118 = vadd.f32 %v1051, %v1104
    %v1119 = vadd.f32 %v1090, %v1108
    %v1120 = vadd.f32 %v1092, %v1112
    %v1121 = vxor.u32 %v1117, 2147483648
    %v1122 = vmul.f32 %v1121, 1.442695
    %v1123 = vpow.pop %v1122
    %v1124 = vadd.f32 %v1123, 1.0
    %v1125 = vrcp.pop %v1124
    %v1126 = vmul.f32 1.0, %v1125
    %v1127 = vxor.u32 %v1118, 2147483648
    %v1128 = vmul.f32 %v1127, 1.442695
    %v1129 = vpow.pop %v1128
    %v1130 = vadd.f32 %v1129, 1.0
    %v1131 = vrcp.pop %v1130
    %v1132 = vmul.f32 1.0, %v1131
    %v1133 = vtanh.pop %v1119
    %v1134 = vxor.u32 %v1120, 2147483648
    %v1135 = vmul.f32 %v1134, 1.442695
    %v1136 = vpow.pop %v1135
    %v1137 = vadd.f32 %v1136, 1.0
    %v1138 = vrcp.pop %v1137
    %v1139 = vmul.f32 1.0, %v1138
    %v1140 = vmul.f32 %v1132, %v609
    %v1141 = vmul.f32 %v1126, %v1133
    %v1142 = vadd.f32 %v1140, %v1141
    %v1143 = vtanh.pop %v1142
    %v1144 = vmul.f32 %v1139, %v1143
    %s1145 = scalar_lea.vmem %s9, 2
    %1146 = vst [vmem:[%s1145] sm:$0x3] %v1144
    %s1147 = scalar_lea.vmem %s10, 2
    %1148 = vst [vmem:[%s1147] sm:$0x3] %v1142
    // Predicated region
    $region50: #{_decoder_step.1} parent=1 // pred_check
      _
    $region51: #{_decoder_step.1} parent=1 // pred_check_branch
      %1150 = sbr.rel (0) target = $region53
    $region52: #{_decoder_step.1} parent=1 // pred_region
      _
    $region53: #{_decoder_step.1} parent=1 // pred_fallthru
      _
    // Predicated region
    $region54: #{_decoder_step.1} parent=1 // pred_check
      _
    $region55: #{_decoder_step.1} parent=1 // pred_check_branch
      %1152 = sbr.rel (0) target = $region57
    $region56: #{_decoder_step.1} parent=1 // pred_region
      _
    $region57: #{_decoder_step.1} parent=1 // pred_fallthru
      _
    // Predicated region
    $region58: #{_decoder_step.1} parent=1 // pred_check
      _
    $region59: #{_decoder_step.1} parent=1 // pred_check_branch
      %1154 = sbr.rel (0) target = $region61
    $region60: #{_decoder_step.1} parent=1 // pred_region
      _
    $region61: #{_decoder_step.1} parent=1 // pred_fallthru
      _
    // Predicated region
    $region62: #{_decoder_step.1} parent=1 // pred_check
      _
    $region63: #{_decoder_step.1} parent=1 // pred_check_branch
      %1156 = sbr.rel (0) target = $region65
    $region64: #{_decoder_step.1} parent=1 // pred_region
      _
    $region65: #{_decoder_step.1} parent=1 // pred_fallthru
      _
    %1157 = vsyncpa [#allocation3], 1
    %1158 = vsyncpa [#allocation5], 1

</llo_original>
